<compile_context>
chip_gen: v5e
topology: v5e:2x2
jax: 0.10.0
libtpu: 0.0.40
codegen_flags: <defaults>
</compile_context>

<pallas_src>
import math

import jax
import jax.numpy as jnp
from jax.experimental import pallas as pl
from jax.experimental.pallas import tpu as pltpu

_LANES = 128


def _distance_shader_kernel(decay_ref, seg_ref, px_ref, sf_ref, out_ref):
    # decay_ref: SMEM (1,) f32 scalar
    # seg_ref:   VMEM (D*128, 128) f32 constant 0/1 selector (resident)
    # px_ref / sf_ref: VMEM (TILE_M, D*128), native input dtype
    # out_ref:   VMEM (TILE_M, 128), native input dtype
    diff = px_ref[...].astype(jnp.float32) - sf_ref[...].astype(jnp.float32)
    sq = diff * diff                                            # VPU
    # Segment-sum of each group of D adjacent lanes via the (idle) MXU:
    # (sq @ S)[r, k] = sum_{c<D} sq[r, k*D + c]  -- exact (0/1 selector, f32 acc).
    sumsq = jnp.dot(sq, seg_ref[...], preferred_element_type=jnp.float32)
    dist = jnp.sqrt(sumsq)                                      # EUP
    out_ref[...] = jnp.exp(-decay_ref[0] * dist).astype(out_ref.dtype)  # EUP


def distance_shader(px_coords, surface_coords, decay_factor, *, tile_m=1024):
    """exp(-decay * ||px - surface||_2) along last dim, keepdim=True."""
    assert px_coords.shape == surface_coords.shape
    orig_shape = px_coords.shape
    d = orig_shape[-1]
    n = math.prod(orig_shape[:-1])
    out_dtype = px_coords.dtype

    # 16-bit inputs: blocks are half the bytes -> double the row tile (same
    # VMEM footprint, longer DMA strips).  Math stays f32 in-kernel.
    if px_coords.dtype.itemsize == 2:
        tile_m *= 2

    n_pad = -(-n // _LANES) * _LANES
    m = n_pad // _LANES
    lanes = d * _LANES

    px2 = px_coords.reshape(n, d)
    sf2 = surface_coords.reshape(n, d)
    if n_pad != n:
        # Ragged tail only (<128 dummy points).  The aligned common case
        # (n % 128 == 0) pays no pad pass at all.
        # TODO(synk): handle the ragged tail in-kernel to avoid this extra pass.
        px2 = jnp.pad(px2, ((0, n_pad - n), (0, 0)))
        sf2 = jnp.pad(sf2, ((0, n_pad - n), (0, 0)))

    # Row-major reshape (n_pad, D) -> (m, D*128) is free (no data movement):
    # point p = r*128 + k occupies lanes [k*D, (k+1)*D) of row r.
    px3 = px2.reshape(m, lanes)
    sf3 = sf2.reshape(m, lanes)

    # Constant 0/1 segment-sum selector, built once; stays resident in VMEM
    # (index_map returns the same block every step, so it is DMA'd once).
    j_idx = jax.lax.broadcasted_iota(jnp.int32, (lanes, _LANES), 0)
    k_idx = jax.lax.broadcasted_iota(jnp.int32, (lanes, _LANES), 1)
    seg = (j_idx // d == k_idx).astype(jnp.float32)

    decay = jnp.asarray(decay_factor, dtype=jnp.float32).reshape(1)

    # Row tiling: full extent when tiny, otherwise a multiple of 8 capped so
    # that there are >= 2 grid steps whenever possible (keeps both v7x
    # TensorCores and their DMA engines busy on the "parallel" axis).
    if m > 8:
        half_m = (((m + 1) // 2 + 7) // 8) * 8  # round_up(cdiv(m, 2), 8)
        tile_m_eff = min(tile_m, half_m)
    else:
        tile_m_eff = m
    grid = (pl.cdiv(m, tile_m_eff),)

    out = pl.pallas_call(
        _distance_shader_kernel,
        out_shape=jax.ShapeDtypeStruct((m, _LANES), out_dtype),
        grid_spec=pltpu.PrefetchScalarGridSpec(
            num_scalar_prefetch=0,
            grid=grid,
            in_specs=[
                pl.BlockSpec(memory_space=pltpu.MemorySpace.SMEM),     # decay
                pl.BlockSpec((lanes, _LANES), lambda i: (0, 0)),       # seg
                pl.BlockSpec((tile_m_eff, lanes), lambda i: (i, 0)),   # px
                pl.BlockSpec((tile_m_eff, lanes), lambda i: (i, 0)),   # sf
            ],
            out_specs=pl.BlockSpec((tile_m_eff, _LANES), lambda i: (i, 0)),
        ),
        compiler_params=pltpu.CompilerParams(
            dimension_semantics=("parallel",),
        ),
    )(decay, seg, px3, sf3)

    return out.reshape(n_pad)[:n].reshape(orig_shape[:-1] + (1,))


if __name__ == "__main__":
    key = jax.random.PRNGKey(0)
    k1, k2, k3, k4 = jax.random.split(key, 4)

    fn = jax.jit(distance_shader)

    # Aligned case (n = 2*16*16 = 512, multiple of 128).
    B, H, W, D = 2, 16, 16, 3
    px_coords = jax.random.normal(k1, (B, H, W, D), dtype=jnp.float32)
    surface_coords = jax.random.normal(k2, (B, H, W, D), dtype=jnp.float32)
    decay_factor = 0.5

    out = fn(px_coords, surface_coords, decay_factor)
    out = jax.block_until_ready(out)
    ref = jnp.exp(
        -decay_factor
        * jnp.linalg.norm(px_coords - surface_coords, axis=-1, keepdims=True)
    )
    assert out.shape == (B, H, W, 1)
    assert jnp.allclose(out, ref, atol=1e-5, rtol=1e-5)

    # Ragged case (n = 3*5*7 = 105, not a multiple of 128) exercises the
    # padded path.
    px_r = jax.random.normal(k3, (3, 5, 7, 3), dtype=jnp.float32)
    sf_r = jax.random.normal(k4, (3, 5, 7, 3), dtype=jnp.float32)
    out_r = jax.block_until_ready(fn(px_r, sf_r, decay_factor))
    ref_r = jnp.exp(
        -decay_factor * jnp.linalg.norm(px_r - sf_r, axis=-1, keepdims=True)
    )
    assert out_r.shape == (3, 5, 7, 1)
    assert jnp.allclose(out_r, ref_r, atol=1e-5, rtol=1e-5)

    print("KERNEL_OK")
</pallas_src>

<mosaic_0001>
module attributes {stable_mosaic.version = 11 : i64} {
  func.func @_distance_shader_kernel(%arg0: i32, %arg1: memref<1xf32, #tpu.memory_space<smem>>, %arg2: memref<384x128xf32, #tpu.memory_space<vmem>>, %arg3: memref<4x384xf32, #tpu.memory_space<vmem>>, %arg4: memref<4x384xf32, #tpu.memory_space<vmem>>, %arg5: memref<4x128xf32, #tpu.memory_space<vmem>>) attributes {dimension_semantics = [#tpu.dimension_semantics<parallel>], iteration_bounds = array<i64: 1>, scalar_prefetch = 0 : i64, scratch_operands = 0 : i64, tpu.core_type = #tpu.core_type<tc>, window_params = [{transform_indices = @transform_0, window_bounds = array<i64: 1>}, {pipeline_mode = #tpu.pipeline_mode<synchronous>, transform_indices = @transform_1, window_bounds = array<i64: 384, 128>}, {transform_indices = @transform_2, window_bounds = array<i64: 4, 384>}, {transform_indices = @transform_3, window_bounds = array<i64: 4, 384>}, {transform_indices = @transform_4, window_bounds = array<i64: 4, 128>}]} {
    %c0 = arith.constant 0 : index
    %c0_0 = arith.constant 0 : index
    %0 = vector.load %arg3[%c0, %c0_0] : memref<4x384xf32, #tpu.memory_space<vmem>>, vector<4x384xf32>
    %c0_1 = arith.constant 0 : index
    %c0_2 = arith.constant 0 : index
    %1 = vector.load %arg4[%c0_1, %c0_2] : memref<4x384xf32, #tpu.memory_space<vmem>>, vector<4x384xf32>
    %2 = arith.subf %0, %1 : vector<4x384xf32>
    %3 = arith.mulf %2, %2 : vector<4x384xf32>
    %c0_3 = arith.constant 0 : index
    %c0_4 = arith.constant 0 : index
    %4 = vector.load %arg2[%c0_3, %c0_4] : memref<384x128xf32, #tpu.memory_space<vmem>>, vector<384x128xf32>
    %cst = arith.constant dense<0.000000e+00> : vector<4x128xf32>
    %5 = tpu.matmul %3, %4, %cst {dimension_numbers = #tpu.dot_dimension_numbers<[1], [0], [0], [1], [0, 0, 1, 1], [], []>} : vector<4x384xf32>, vector<384x128xf32>, vector<4x128xf32> -> vector<4x128xf32>
    %6 = math.sqrt %5 : vector<4x128xf32>
    %c0_5 = arith.constant 0 : index
    %7 = memref.load %arg1[%c0_5] : memref<1xf32, #tpu.memory_space<smem>>
    %cst_6 = arith.constant 0.000000e+00 : f32
    %8 = arith.subf %cst_6, %7 : f32
    %9 = vector.broadcast %8 : f32 to vector<4x128xf32>
    %10 = arith.mulf %9, %6 : vector<4x128xf32>
    %11 = math.exp %10 : vector<4x128xf32>
    %c0_7 = arith.constant 0 : index
    %c0_8 = arith.constant 0 : index
    %12 = vector.load %arg5[%c0_7, %c0_8] : memref<4x128xf32, #tpu.memory_space<vmem>>, vector<4x128xf32>
    tpu.vector_store %arg5[%c0_7, %c0_8], %11 {strides = array<i32>} : memref<4x128xf32, #tpu.memory_space<vmem>>, vector<4x128xf32>,
    return
  }
  func.func @transform_0(%arg0: i32) -> i32 {
    %c0_i32 = arith.constant 0 : i32
    %c0_i32_0 = arith.constant 0 : i32
    return %c0_i32 : i32
  }
  func.func @transform_1(%arg0: i32) -> (i32, i32) {
    %c0_i32 = arith.constant 0 : i32
    %c0_i32_0 = arith.constant 0 : i32
    %c0_i32_1 = arith.constant 0 : i32
    return %c0_i32, %c0_i32_0 : i32, i32
  }
  func.func @transform_2(%arg0: i32) -> (i32, i32) {
    %c0_i32 = arith.constant 0 : i32
    %c0_i32_0 = arith.constant 0 : i32
    return %arg0, %c0_i32 : i32, i32
  }
  func.func @transform_3(%arg0: i32) -> (i32, i32) {
    %c0_i32 = arith.constant 0 : i32
    %c0_i32_0 = arith.constant 0 : i32
    return %arg0, %c0_i32 : i32, i32
  }
  func.func @transform_4(%arg0: i32) -> (i32, i32) {
    %c0_i32 = arith.constant 0 : i32
    %c0_i32_0 = arith.constant 0 : i32
    return %arg0, %c0_i32 : i32, i32
  }
}

</mosaic_0001>

<llo_original>
// kernel: distance_shader.1
$region0: #{distance_shader.1}
  #allocation0 [shape = 'u32[]', space=smem, size = 0x4, offset = 0x4, fixed_abs, tag = 'smem constant byte address 0x4 - core index']
  #allocation1 [shape = 'u32[72,128]{1,0:T(1,128)}', space=vmem, size = 0x9000, scoped, tag = 'internal scratch']
  #allocation2 [shape = 'f32[1]{0:T(128)S(6)}', space=smem, size = 0x200, scoped, tag = 'scoped memory for distance_shader.1']
  %s0 = inlined_call_operand.<no memory space> [shape: f32[1], index: 0, kind: input, shape index: {}]
  %s1 = inlined_call_operand.vmem [shape: f32[384,128], index: 1, kind: input, shape index: {}]
  %s2 = inlined_call_operand.vmem [shape: f32[4,384], index: 2, kind: input, shape index: {}]
  %s3 = inlined_call_operand.vmem [shape: f32[4,384], index: 3, kind: input, shape index: {}]
  %s4 = inlined_call_operand.vmem [shape: f32[4,128], index: 4, kind: output, shape index: {}]
  %s5 = sld [smem:[#allocation0]]
  $region26: #{distance_shader.1} parent=0
    _
  %s7 = ssub.s32 1, %s5
  %s8 = scalar_select 0, %s7, %s5
  %9 = sst [smem:[#allocation2]] %s0
  // Predicated region
  $region2: #{distance_shader.1} parent=0 // pred_check
    _
  $region3: #{distance_shader.1} parent=0 // pred_check_branch
    %11 = sbr.rel (0) target = $region5
  $region4: #{distance_shader.1} parent=0 // pred_region
    _
  $region5: #{distance_shader.1} parent=0 // pred_fallthru
    _
  // Predicated region
  $region6: #{distance_shader.1} parent=0 // pred_check
    _
  $region7: #{distance_shader.1} parent=0 // pred_check_branch
    %13 = sbr.rel (0) target = $region9
  $region8: #{distance_shader.1} parent=0 // pred_region
    _
  $region9: #{distance_shader.1} parent=0 // pred_fallthru
    _
  // Predicated region
  $region10: #{distance_shader.1} parent=0 // pred_check
    _
  $region11: #{distance_shader.1} parent=0 // pred_check_branch
    %15 = sbr.rel (0) target = $region13
  $region12: #{distance_shader.1} parent=0 // pred_region
    _
  $region13: #{distance_shader.1} parent=0 // pred_fallthru
    _
  // Predicated region
  $region14: #{distance_shader.1} parent=0 // pred_check
    _
  $region15: #{distance_shader.1} parent=0 // pred_check_branch
    %17 = sbr.rel (0) target = $region17
  $region16: #{distance_shader.1} parent=0 // pred_region
    _
  $region17: #{distance_shader.1} parent=0 // pred_fallthru
    _
  %v18 = vld [vmem:[%s2] sm:$0xff]
  %v19 = vld [vmem:[%s2 + $0x8] sm:$0xf]
  %v20 = vld [vmem:[%s3] sm:$0xff]
  %v21 = vld [vmem:[%s3 + $0x8] sm:$0xf]
  %v22 = vsub.f32 %v18, %v20
  %v23 = vsub.f32 %v19, %v21
  %v24 = vmul.f32 %v22, %v22
  %v25 = vmul.f32 %v23, %v23
  %v26 = vld [vmem:[%s1] sm:$0xff]
  %v27 = vld [vmem:[%s1 + $0x8] sm:$0xff]
  %v28 = vld [vmem:[%s1 + $0x10] sm:$0xff]
  %v29 = vld [vmem:[%s1 + $0x18] sm:$0xff]
  %v30 = vld [vmem:[%s1 + $0x20] sm:$0xff]
  %v31 = vld [vmem:[%s1 + $0x28] sm:$0xff]
  %v32 = vld [vmem:[%s1 + $0x30] sm:$0xff]
  %v33 = vld [vmem:[%s1 + $0x38] sm:$0xff]
  %v34 = vld [vmem:[%s1 + $0x40] sm:$0xff]
  %v35 = vld [vmem:[%s1 + $0x48] sm:$0xff]
  %v36 = vld [vmem:[%s1 + $0x50] sm:$0xff]
  %v37 = vld [vmem:[%s1 + $0x58] sm:$0xff]
  %v38 = vld [vmem:[%s1 + $0x60] sm:$0xff]
  %v39 = vld [vmem:[%s1 + $0x68] sm:$0xff]
  %v40 = vld [vmem:[%s1 + $0x70] sm:$0xff]
  %v41 = vld [vmem:[%s1 + $0x78] sm:$0xff]
  %v42 = vld [vmem:[%s1 + $0x80] sm:$0xff]
  %v43 = vld [vmem:[%s1 + $0x88] sm:$0xff]
  %v44 = vld [vmem:[%s1 + $0x90] sm:$0xff]
  %v45 = vld [vmem:[%s1 + $0x98] sm:$0xff]
  %v46 = vld [vmem:[%s1 + $0xa0] sm:$0xff]
  %v47 = vld [vmem:[%s1 + $0xa8] sm:$0xff]
  %v48 = vld [vmem:[%s1 + $0xb0] sm:$0xff]
  %v49 = vld [vmem:[%s1 + $0xb8] sm:$0xff]
  %v50 = vld [vmem:[%s1 + $0xc0] sm:$0xff]
  %v51 = vld [vmem:[%s1 + $0xc8] sm:$0xff]
  %v52 = vld [vmem:[%s1 + $0xd0] sm:$0xff]
  %v53 = vld [vmem:[%s1 + $0xd8] sm:$0xff]
  %v54 = vld [vmem:[%s1 + $0xe0] sm:$0xff]
  %v55 = vld [vmem:[%s1 + $0xe8] sm:$0xff]
  %v56 = vld [vmem:[%s1 + $0xf0] sm:$0xff]
  %v57 = vld [vmem:[%s1 + $0xf8] sm:$0xff]
  %v58 = vld [vmem:[%s1 + $0x100] sm:$0xff]
  %v59 = vld [vmem:[%s1 + $0x108] sm:$0xff]
  %v60 = vld [vmem:[%s1 + $0x110] sm:$0xff]
  %v61 = vld [vmem:[%s1 + $0x118] sm:$0xff]
  %v62 = vld [vmem:[%s1 + $0x120] sm:$0xff]
  %v63 = vld [vmem:[%s1 + $0x128] sm:$0xff]
  %v64 = vld [vmem:[%s1 + $0x130] sm:$0xff]
  %v65 = vld [vmem:[%s1 + $0x138] sm:$0xff]
  %v66 = vld [vmem:[%s1 + $0x140] sm:$0xff]
  %v67 = vld [vmem:[%s1 + $0x148] sm:$0xff]
  %v68 = vld [vmem:[%s1 + $0x150] sm:$0xff]
  %v69 = vld [vmem:[%s1 + $0x158] sm:$0xff]
  %v70 = vld [vmem:[%s1 + $0x160] sm:$0xff]
  %v71 = vld [vmem:[%s1 + $0x168] sm:$0xff]
  %v72 = vld [vmem:[%s1 + $0x170] sm:$0xff]
  %v73 = vld [vmem:[%s1 + $0x178] sm:$0xff]
  %76 = vst [vmem:[#allocation1] ss:$2 sm:$0xff] %v24
  %s77 = scalar_lea.vmem [#allocation1], 16
  %78 = vst [vmem:[%s77] ss:$2 sm:$0xff] %v25
  %v79 = vld.sshfl [vmem:[#allocation1] sm:$0xff pattern:$0x75316420]
  %v80 = vld.sshfl [vmem:[#allocation1 + $0x8] sm:$0xff pattern:$0x75316420]
  %v81 = vld.sshfl [vmem:[#allocation1 + $0x10] sm:$0xff pattern:$0x75316420]
  %85 = vmatpush.msra.mxu0 %v41
  %86 = vmatpush.msra.mxu0 %v40
  %87 = vmatpush.msra.mxu0 %v39
  %88 = vmatpush.msra.mxu0 %v38
  %89 = vmatpush.msra.mxu0 %v37
  %90 = vmatpush.msra.mxu0 %v36
  %91 = vmatpush.msra.mxu0 %v35
  %92 = vmatpush.msra.mxu0 %v34
  %93 = vmatpush.msra.mxu0 %v33
  %94 = vmatpush.msra.mxu0 %v32
  %95 = vmatpush.msra.mxu0 %v31
  %96 = vmatpush.msra.mxu0 %v30
  %97 = vmatpush.msra.mxu0 %v29
  %98 = vmatpush.msra.mxu0 %v28
  %99 = vmatpush.msra.mxu0 %v27
  %100 = vmatpush.msra.mxu0 %v26
  %101 = vmatmul.f32.gmra.mxu0 %v79
  %v102 = vpop.f32.mrf.mxu0
  %v103 = vadd.f32 0.0, %v102
  %104 = vdwg.mxu0
  %105 = vmatpush.msra.mxu0 %v57
  %106 = vmatpush.msra.mxu0 %v56
  %107 = vmatpush.msra.mxu0 %v55
  %108 = vmatpush.msra.mxu0 %v54
  %109 = vmatpush.msra.mxu0 %v53
  %110 = vmatpush.msra.mxu0 %v52
  %111 = vmatpush.msra.mxu0 %v51
  %112 = vmatpush.msra.mxu0 %v50
  %113 = vmatpush.msra.mxu0 %v49
  %114 = vmatpush.msra.mxu0 %v48
  %115 = vmatpush.msra.mxu0 %v47
  %116 = vmatpush.msra.mxu0 %v46
  %117 = vmatpush.msra.mxu0 %v45
  %118 = vmatpush.msra.mxu0 %v44
  %119 = vmatpush.msra.mxu0 %v43
  %120 = vmatpush.msra.mxu0 %v42
  %121 = vmatmul.f32.gmra.mxu0 %v80
  %v122 = vpop.f32.mrf.mxu0
  %v123 = vadd.f32 %v103, %v122
  %124 = vdwg.mxu0
  %125 = vmatpush.msra.mxu0 %v73
  %126 = vmatpush.msra.mxu0 %v72
  %127 = vmatpush.msra.mxu0 %v71
  %128 = vmatpush.msra.mxu0 %v70
  %129 = vmatpush.msra.mxu0 %v69
  %130 = vmatpush.msra.mxu0 %v68
  %131 = vmatpush.msra.mxu0 %v67
  %132 = vmatpush.msra.mxu0 %v66
  %133 = vmatpush.msra.mxu0 %v65
  %134 = vmatpush.msra.mxu0 %v64
  %135 = vmatpush.msra.mxu0 %v63
  %136 = vmatpush.msra.mxu0 %v62
  %137 = vmatpush.msra.mxu0 %v61
  %138 = vmatpush.msra.mxu0 %v60
  %139 = vmatpush.msra.mxu0 %v59
  %140 = vmatpush.msra.mxu0 %v58
  %141 = vmatmul.f32.gmra.mxu0 %v81
  %v142 = vpop.f32.mrf.mxu0
  %v143 = vadd.f32 %v123, %v142
  %144 = vdwg.mxu0
  %v145 = vrsqrt.pop %v143
  %v146 = vmul.f32 %v145, %v143
  %v147 = vmul.f32 %v146, %v145
  %v148 = vmul.f32 0.5, %v147
  %v149 = vsub.f32 1.5, %v148
  %v150 = vmul.f32 %v145, %v149
  %v151 = vmul.f32 %v143, %v150
  %vm152 = vcmp.eq.f32.partialorder %v143, inf
  %v153 = vsel %vm152, %v143, %v151
  %vm154 = vcmp.eq.f32.partialorder %v143, 0.0
  %v155 = vand.u32 %v143, 2147483648
  %v156 = vsel %vm154, %v155, %v153
  %s157 = sld [smem:[#allocation2]]
  %s158 = ssub.f32 0.0, %s157
  %v159 = vstv %s158
  %v160 = vmul.f32 %v159, %v156
  %v161 = vmul.f32 %v160, 1.442695
  %v162 = vpow.pop %v161
  %163 = vst [vmem:[%s4] sm:$0xf] %v162
  // Predicated region
  $region18: #{distance_shader.1} parent=0 // pred_check
    _
  $region19: #{distance_shader.1} parent=0 // pred_check_branch
    %165 = sbr.rel (0) target = $region21
  $region20: #{distance_shader.1} parent=0 // pred_region
    _
  $region21: #{distance_shader.1} parent=0 // pred_fallthru
    _
  // Predicated region
  $region22: #{distance_shader.1} parent=0 // pred_check
    _
  $region23: #{distance_shader.1} parent=0 // pred_check_branch
    %167 = sbr.rel (0) target = $region25
  $region24: #{distance_shader.1} parent=0 // pred_region
    _
  $region25: #{distance_shader.1} parent=0 // pred_fallthru
    _

</llo_original>
